<compile_context>
chip_gen: v5e
topology: v5e:2x2
jax: 0.10.0
libtpu: 0.0.40
codegen_flags: <defaults>
</compile_context>

<pallas_src>
import functools

import jax
import jax.numpy as jnp
from jax.experimental import pallas as pl
from jax.experimental.pallas import tpu as pltpu


def _attention_kernel(ht_ref, w_ref, b_ref, len_ref, out_ref, *, row_chunk):
    """One grid step == TB batch rows.

    ht_ref  : VMEM (TB, L, 2H)    hidden states
    w_ref   : VMEM (1, 2H)        dense weight (torch Linear layout: (out, in))
    b_ref   : SMEM (1,)           dense bias
    len_ref : VMEM (TB, 1) int32  sequence lengths
    out_ref : VMEM (TB, L)        softmax weights (lane-dense)
    row_chunk (static): batch rows processed per inner step so the f32
        cast / product intermediates stay vreg-sized (no full-tile spills).
    """
    w = w_ref[...].astype(jnp.float32)                 # (1, 2H), broadcasts on lanes
    bias = b_ref[0]

    def rows_softmax(ht_c, len_c):
        # Linear(2H -> 1) as a VPU multiply + cross-lane reduce (avoids a
        # degenerate N=1 MXU matmul and keeps et lane-dense as (rows, L)).
        et = jnp.sum(ht_c.astype(jnp.float32) * w, axis=-1) + bias   # (rows, L)
        pos = jax.lax.broadcasted_iota(jnp.int32, et.shape, 1)
        et = jnp.where(pos < len_c, et, -jnp.inf)
        # Numerically-stable masked softmax over the sequence (lane) axis.
        # Exact divide: only (rows, 1) denominators, so approx reciprocal buys
        # nothing and costs row-sum accuracy.
        m = jnp.max(et, axis=-1, keepdims=True)
        p = jnp.exp(et - m)
        return p / jnp.sum(p, axis=-1, keepdims=True)
        # NOTE: a row with length == 0 yields all -inf logits -> NaN row,
        # matching torch's softmax-of-all(-inf) behavior.

    tb = out_ref.shape[0]
    if row_chunk >= tb:
        out_ref[...] = rows_softmax(ht_ref[...], len_ref[...]).astype(out_ref.dtype)
    else:
        n_chunks = tb // row_chunk       # tb is a static multiple of row_chunk

        def body(c, carry):
            r0 = pl.multiple_of(c * row_chunk, row_chunk)
            rows = pl.ds(r0, row_chunk)
            out_ref[rows, :] = rows_softmax(
                ht_ref[rows, :, :], len_ref[rows, :]).astype(out_ref.dtype)
            return carry

        jax.lax.fori_loop(0, n_chunks, body, 0, unroll=n_chunks <= 8)


def _round_up(x, m):
    return -(-x // m) * m


def _vmem_limit_bytes():
    """Scoped-VMEM limit derived from the chip (safe fallback if unavailable)."""
    try:
        cap = int(pltpu.get_tpu_info().vmem_capacity_bytes)
    except Exception:
        cap = 64 << 20            # conservative: v7x per-TensorCore VMEM
    # ~48 MiB on 64 MiB parts (v7x), ~96 MiB on 128 MiB parts (v5e/v6e).
    return max(32 << 20, min(cap * 3 // 4, 96 << 20))


def _choose_tiling(B, L, H2, itemsize, vmem_limit):
    """Pick (batch_tile, num_tiles, row_chunk, ht_buffer_count).

    VMEM accounting includes (8,128) layout padding of the last two dims and
    reserves headroom for in-kernel f32 temporaries.
    """
    sub_in = {4: 8, 2: 16, 1: 32}.get(itemsize, 8)
    l_sub = _round_up(L, sub_in)
    h2_lane = _round_up(H2, 128)   # TODO(synk): fold L into the lane axis when
                                   # 2H << 128 to recover the 128-lane padding.
    l_lane = _round_up(L, 128)

    ht_row = l_sub * h2_lane * itemsize      # one batch row of the ht tile in VMEM
    out_row = l_lane * 4                     # one f32 output row (lane padded)
    len_row = 128 * 4                        # one lengths row (lane padded)
    per_row = 2 * ht_row + 2 * out_row + 2 * len_row   # double-buffered streams

    temp_reserve = 4 << 20                   # in-kernel f32 chunk temps, misc
    budget = max(vmem_limit - temp_reserve, vmem_limit // 2)
    tb_max = budget // per_row

    if tb_max >= B:
        # Small-problem fast path: one grid step, full-array blocks.
        tb, num_tiles = B, 1
    else:
        tb = max(8, (tb_max // 8) * 8)
        # Prefer a tile that divides B (no ragged last tile); otherwise keep
        # grid = cdiv(B, tb) and let Pallas mask the ragged last block.  ht is
        # never padded/copied in HBM either way.
        for cand in range(tb, tb // 2, -8):
            if B % cand == 0:
                tb = cand
                break
        num_tiles = -(-B // tb)
        # TODO(synk): if even tb=8 exceeds the budget (huge L*2H per row), add
        # an inner L-tiling with a two-pass/online softmax.

    # Rows per inner kernel step: keep the f32 cast+product chunk <= ~1 MiB.
    chunk_budget = 1 << 20
    row_bytes_f32 = _round_up(L, 8) * h2_lane * 4
    if tb % 8 != 0 or 2 * tb * row_bytes_f32 <= chunk_budget:
        row_chunk = tb
    else:
        row_chunk = 8
        for cand in range(8, tb + 1, 8):
            if tb % cand == 0 and 2 * cand * row_bytes_f32 <= chunk_budget:
                row_chunk = cand

    # Deeper buffering on the ht stream only when tiles ended up small and a
    # third buffer still fits (hides per-step DMA setup on fast-HBM parts).
    ht_tile = tb * ht_row
    ht_buffers = 2
    if (num_tiles > 2 and ht_tile < (2 << 20)
            and 3 * ht_tile + tb * (2 * out_row + 2 * len_row) + temp_reserve <= vmem_limit):
        ht_buffers = 3

    return int(tb), int(num_tiles), int(row_chunk), int(ht_buffers)


@jax.jit
def attention_layer(ht, lengths, w, b):
    """ht: (B, L, 2H), lengths: (B,) int, w: (1, 2H), b: (1,).

    Returns alpha: (B, 1, L) float32 — same semantics as the torch module.
    """
    B, L, H2 = ht.shape
    assert w.shape == (1, H2) and b.shape == (1,)

    itemsize = jnp.dtype(ht.dtype).itemsize
    vmem_limit = _vmem_limit_bytes()
    tb, num_tiles, row_chunk, ht_buffers = _choose_tiling(
        B, L, H2, itemsize, vmem_limit)

    # Only the tiny lengths vector is ever padded (padded rows get length = L;
    # their outputs are masked ragged writes and never reach HBM).
    lengths = lengths.astype(jnp.int32)
    Bp = num_tiles * tb
    if Bp != B:
        lengths = jnp.concatenate(
            [lengths, jnp.full((Bp - B,), L, jnp.int32)])
    lengths_col = lengths.reshape(-1, 1)

    if ht_buffers == 2:
        ht_spec = pl.BlockSpec((tb, L, H2), lambda i: (i, 0, 0))
    else:
        ht_spec = pl.BlockSpec((tb, L, H2), lambda i: (i, 0, 0),
                               pipeline_mode=pl.Buffered(ht_buffers))

    grid_spec = pltpu.PrefetchScalarGridSpec(
        num_scalar_prefetch=0,
        grid=(num_tiles,),
        in_specs=[
            ht_spec,                                               # ht batch tile
            pl.BlockSpec((1, H2), lambda i: (0, 0)),               # weight row
            pl.BlockSpec(memory_space=pltpu.MemorySpace.SMEM),     # bias scalar
            pl.BlockSpec((tb, 1), lambda i: (i, 0)),               # lengths
        ],
        out_specs=pl.BlockSpec((tb, L), lambda i: (i, 0)),
    )

    cost = pl.CostEstimate(
        flops=2 * B * L * H2,
        transcendentals=B * L,
        bytes_accessed=B * L * H2 * itemsize + B * L * 4 + B * 4 + H2 * 4,
    )

    out = pl.pallas_call(
        functools.partial(_attention_kernel, row_chunk=row_chunk),
        out_shape=jax.ShapeDtypeStruct((B, L), jnp.float32),
        grid_spec=grid_spec,
        compiler_params=pltpu.CompilerParams(
            dimension_semantics=("parallel",),
            vmem_limit_bytes=vmem_limit,
        ),
        cost_estimate=cost,
    )(ht, w, b, lengths_col)

    # (B, L) -> (B, 1, L): unsqueeze(1) is a free reshape.
    return out.reshape(B, 1, L)


def _reference(ht, lengths, w, b):
    """Pure-JAX reference mirroring the torch forward pass."""
    _, L, _ = ht.shape
    et = jnp.einsum("blh,h->bl", ht, w[0]) + b[0]                  # (B, L)
    mask = jnp.arange(L)[None, :] < lengths[:, None]
    et = jnp.where(mask, et, -jnp.inf)
    return jax.nn.softmax(et, axis=1)[:, None, :]                  # (B, 1, L)


if __name__ == "__main__":
    # n_hidden_state=16 -> Linear sees 2*16 = 32 input features; seq=8; batch=16.
    B, L, H = 16, 8, 16
    H2 = 2 * H

    key = jax.random.PRNGKey(0)
    k_ht, k_w, k_b = jax.random.split(key, 3)

    ht = jax.random.normal(k_ht, (B, L, H2), dtype=jnp.float32)
    lengths = jnp.array([8, 5, 1, 8, 3, 7, 2, 6, 8, 4, 5, 8, 1, 2, 3, 8],
                        dtype=jnp.int32)

    # Deterministic "Linear(2H, 1)" params, torch weight layout (out, in).
    bound = 1.0 / (H2 ** 0.5)
    w = jax.random.uniform(k_w, (1, H2), jnp.float32, -bound, bound)
    b = jax.random.uniform(k_b, (1,), jnp.float32, -bound, bound)

    alpha = attention_layer(ht, lengths, w, b)
    alpha = jax.block_until_ready(alpha)

    ref = _reference(ht, lengths, w, b)
    assert alpha.shape == (B, 1, L), alpha.shape
    assert jnp.allclose(alpha, ref, atol=1e-5, rtol=1e-5)
    # Padded positions must get exactly zero weight; rows sum to 1 (exact div).
    pad_mask = jnp.arange(L)[None, :] >= lengths[:, None]
    assert bool(jnp.all(jnp.where(pad_mask, alpha[:, 0, :], 0.0) == 0.0))
    assert jnp.allclose(alpha.sum(axis=-1), 1.0, atol=1e-5)

    print("KERNEL_OK")
</pallas_src>

<mosaic_0001>
module attributes {stable_mosaic.version = 11 : i64} {
  func.func @_attention_kernel(%arg0: i32, %arg1: memref<16x8x32xf32, #tpu.memory_space<vmem>>, %arg2: memref<1x32xf32, #tpu.memory_space<vmem>>, %arg3: memref<1xf32, #tpu.memory_space<smem>>, %arg4: memref<16x1xi32, #tpu.memory_space<vmem>>, %arg5: memref<16x8xf32, #tpu.memory_space<vmem>>) attributes {dimension_semantics = [#tpu.dimension_semantics<parallel>], iteration_bounds = array<i64: 1>, scalar_prefetch = 0 : i64, scratch_operands = 0 : i64, tpu.core_type = #tpu.core_type<tc>, window_params = [{transform_indices = @transform_0, window_bounds = array<i64: 16, 8, 32>}, {pipeline_mode = #tpu.pipeline_mode<synchronous>, transform_indices = @transform_1, window_bounds = array<i64: 1, 32>}, {transform_indices = @transform_2, window_bounds = array<i64: 1>}, {transform_indices = @transform_3, window_bounds = array<i64: 16, 1>}, {transform_indices = @transform_4, window_bounds = array<i64: 16, 8>}]} {
    %c0 = arith.constant 0 : index
    %c0_0 = arith.constant 0 : index
    %0 = vector.load %arg2[%c0, %c0_0] : memref<1x32xf32, #tpu.memory_space<vmem>>, vector<1x32xf32>
    %c0_1 = arith.constant 0 : index
    %1 = memref.load %arg3[%c0_1] : memref<1xf32, #tpu.memory_space<smem>>
    %c0_2 = arith.constant 0 : index
    %c0_3 = arith.constant 0 : index
    %c0_4 = arith.constant 0 : index
    %2 = vector.load %arg1[%c0_2, %c0_3, %c0_4] : memref<16x8x32xf32, #tpu.memory_space<vmem>>, vector<16x8x32xf32>
    %c0_5 = arith.constant 0 : index
    %c0_6 = arith.constant 0 : index
    %3 = vector.load %arg4[%c0_5, %c0_6] : memref<16x1xi32, #tpu.memory_space<vmem>>, vector<16x1xi32>
    %4 = vector.shape_cast %0 : vector<1x32xf32> to vector<1x1x32xf32>
    %5 = vector.broadcast %4 : vector<1x1x32xf32> to vector<16x8x32xf32>
    %6 = arith.mulf %2, %5 : vector<16x8x32xf32>
    %cst = arith.constant dense<0.000000e+00> : vector<16x8xf32>
    %7 = vector.multi_reduction <add>, %6, %cst [2] : vector<16x8x32xf32> to vector<16x8xf32>
    %8 = vector.broadcast %1 : f32 to vector<16x8xf32>
    %9 = arith.addf %7, %8 : vector<16x8xf32>
    %10 = tpu.iota {dimensions = array<i32: 1>} : vector<16x8xi32>
    %11 = vector.broadcast %3 : vector<16x1xi32> to vector<16x8xi32>
    %12 = arith.cmpi slt, %10, %11 : vector<16x8xi32>
    %cst_7 = arith.constant 0xFF800000 : f32
    %13 = vector.broadcast %cst_7 : f32 to vector<16x8xf32>
    %14 = arith.select %12, %9, %13 : vector<16x8xi1>, vector<16x8xf32>
    %cst_8 = arith.constant dense<0xFF800000> : vector<16xf32>
    %15 = vector.multi_reduction <maximumf>, %14, %cst_8 [1] : vector<16x8xf32> to vector<16xf32>
    %16 = vector.shape_cast %15 : vector<16xf32> to vector<16x1xf32>
    %17 = vector.broadcast %16 : vector<16x1xf32> to vector<16x8xf32>
    %18 = arith.subf %14, %17 : vector<16x8xf32>
    %19 = math.exp %18 : vector<16x8xf32>
    %cst_9 = arith.constant dense<0.000000e+00> : vector<16xf32>
    %20 = vector.multi_reduction <add>, %19, %cst_9 [1] : vector<16x8xf32> to vector<16xf32>
    %21 = vector.shape_cast %20 : vector<16xf32> to vector<16x1xf32>
    %22 = vector.broadcast %21 : vector<16x1xf32> to vector<16x8xf32>
    %23 = arith.divf %19, %22 : vector<16x8xf32>
    %c0_10 = arith.constant 0 : index
    %c0_11 = arith.constant 0 : index
    %24 = vector.load %arg5[%c0_10, %c0_11] : memref<16x8xf32, #tpu.memory_space<vmem>>, vector<16x8xf32>
    tpu.vector_store %arg5[%c0_10, %c0_11], %23 {strides = array<i32>} : memref<16x8xf32, #tpu.memory_space<vmem>>, vector<16x8xf32>,
    return
  }
  func.func @transform_0(%arg0: i32) -> (i32, i32, i32) {
    %c0_i32 = arith.constant 0 : i32
    %c0_i32_0 = arith.constant 0 : i32
    %c0_i32_1 = arith.constant 0 : i32
    return %arg0, %c0_i32, %c0_i32_0 : i32, i32, i32
  }
  func.func @transform_1(%arg0: i32) -> (i32, i32) {
    %c0_i32 = arith.constant 0 : i32
    %c0_i32_0 = arith.constant 0 : i32
    %c0_i32_1 = arith.constant 0 : i32
    return %c0_i32, %c0_i32_0 : i32, i32
  }
  func.func @transform_2(%arg0: i32) -> i32 {
    %c0_i32 = arith.constant 0 : i32
    %c0_i32_0 = arith.constant 0 : i32
    return %c0_i32 : i32
  }
  func.func @transform_3(%arg0: i32) -> (i32, i32) {
    %c0_i32 = arith.constant 0 : i32
    %c0_i32_0 = arith.constant 0 : i32
    return %arg0, %c0_i32 : i32, i32
  }
  func.func @transform_4(%arg0: i32) -> (i32, i32) {
    %c0_i32 = arith.constant 0 : i32
    %c0_i32_0 = arith.constant 0 : i32
    return %arg0, %c0_i32 : i32, i32
  }
}

</mosaic_0001>

<llo_original>
// kernel: attention_layer.1
$region0: #{attention_layer.1}
  #allocation0 [shape = 'u32[]', space=smem, size = 0x4, offset = 0x4, fixed_abs, tag = 'smem constant byte address 0x4 - core index']
  #allocation1 [shape = 'u32[72,128]{1,0:T(1,128)}', space=vmem, size = 0x9000, scoped, tag = 'internal scratch']
  #allocation2 [shape = 'f32[1]{0:T(128)S(6)}', space=smem, size = 0x200, scoped, tag = 'scoped memory for attention_layer.1']
  %s0 = inlined_call_operand.hbm [shape: f32[16,8,32], index: 0, kind: input, shape index: {}]
  %s1 = inlined_call_operand.vmem [shape: f32[1,32], index: 1, kind: input, shape index: {}]
  %s2 = inlined_call_operand.<no memory space> [shape: f32[1], index: 2, kind: input, shape index: {}]
  %s3 = inlined_call_operand.vmem [shape: s32[16,1], index: 3, kind: input, shape index: {}]
  %s4 = inlined_call_operand.vmem [shape: f32[16,8], index: 4, kind: output, shape index: {}]
  %s5 = sld [smem:[#allocation0]]
  $region30: #{attention_layer.1} parent=0
    _
  %s7 = ssub.s32 1, %s5
  %s8 = scalar_select 0, %s7, %s5
  %9 = sst [smem:[#allocation2]] %s2
  $region1: #{attention_layer.1} parent=0
    #allocation3 [shape = 'u8[65536]{0}', space=vmem, size = 0x10000, scoped, tag = 'input window, operand 0, single buffered']
    #allocation4 [shape = 's32[1]{0}', space=sflag, size = 0x4, scoped, tag = 'scoped memory for attention_layer.1']
    %10 = vsyncpa [#allocation4], 0
    // Predicated region
    $region2: #{attention_layer.1} parent=1 // pred_check
      _
    $region3: #{attention_layer.1} parent=1 // pred_check_branch
      %12 = sbr.rel (0) target = $region5
    $region4: #{attention_layer.1} parent=1 // pred_region
      %14 = vsyncadd [#allocation4], 0
      %s15 = sshll.u32 %s0, 4
      %s16 = int_to_ptr.hbm [resolvable:$true] %s15
      %s17 = sshll.u32 [#allocation3], 4
      %s18 = int_to_ptr.vmem [resolvable:$true] %s17
      %23 = dma.hbm_to_vmem [thread:$0]  %s16, 2048, %s18, [#allocation4], 128, 128, 8
    $region5: #{attention_layer.1} parent=1 // pred_fallthru
      _
    // Predicated region
    $region6: #{attention_layer.1} parent=1 // pred_check
      _
    $region7: #{attention_layer.1} parent=1 // pred_check_branch
      %25 = sbr.rel (0) target = $region9
    $region8: #{attention_layer.1} parent=1 // pred_region
      _
    $region9: #{attention_layer.1} parent=1 // pred_fallthru
      _
    // Predicated region
    $region10: #{attention_layer.1} parent=1 // pred_check
      _
    $region11: #{attention_layer.1} parent=1 // pred_check_branch
      %27 = sbr.rel (0) target = $region13
    $region12: #{attention_layer.1} parent=1 // pred_region
      _
    $region13: #{attention_layer.1} parent=1 // pred_fallthru
      _
    // Predicated region
    $region14: #{attention_layer.1} parent=1 // pred_check
      _
    $region15: #{attention_layer.1} parent=1 // pred_check_branch
      %29 = sbr.rel (0) target = $region17
    $region16: #{attention_layer.1} parent=1 // pred_region
      _
    $region17: #{attention_layer.1} parent=1 // pred_fallthru
      _
    // Predicated region
    $region18: #{attention_layer.1} parent=1 // pred_check
      _
    $region19: #{attention_layer.1} parent=1 // pred_check_branch
      %31 = sbr.rel (0) target = $region21
    $region20: #{attention_layer.1} parent=1 // pred_region
      %33 = dma.done [#allocation4], 2048
    $region21: #{attention_layer.1} parent=1 // pred_fallthru
      _
    %v34 = vld [vmem:[%s1] sm:$0x1]
    %s35 = sld [smem:[#allocation2]]
    %v36 = vld [vmem:[#allocation3] sm:$0xff]
    %v37 = vld [vmem:[#allocation3 + $0x8] sm:$0xff]
    %v38 = vld [vmem:[#allocation3 + $0x10] sm:$0xff]
    %v39 = vld [vmem:[#allocation3 + $0x18] sm:$0xff]
    %v40 = vld [vmem:[#allocation3 + $0x20] sm:$0xff]
    %v41 = vld [vmem:[#allocation3 + $0x28] sm:$0xff]
    %v42 = vld [vmem:[#allocation3 + $0x30] sm:$0xff]
    %v43 = vld [vmem:[#allocation3 + $0x38] sm:$0xff]
    %v44 = vld [vmem:[#allocation3 + $0x40] sm:$0xff]
    %v45 = vld [vmem:[#allocation3 + $0x48] sm:$0xff]
    %v46 = vld [vmem:[#allocation3 + $0x50] sm:$0xff]
    %v47 = vld [vmem:[#allocation3 + $0x58] sm:$0xff]
    %v48 = vld [vmem:[#allocation3 + $0x60] sm:$0xff]
    %v49 = vld [vmem:[#allocation3 + $0x68] sm:$0xff]
    %v50 = vld [vmem:[#allocation3 + $0x70] sm:$0xff]
    %v51 = vld [vmem:[#allocation3 + $0x78] sm:$0xff]
    %v52 = vld [vmem:[%s3] sm:$0xff]
    %v53 = vld [vmem:[%s3 + $0x8] sm:$0xff]
    %v55 = vperm.slane %v34, 0
    %v57 = vmul.f32 %v36, %v55
    %v58 = vmul.f32 %v37, %v55
    %v59 = vmul.f32 %v38, %v55
    %v60 = vmul.f32 %v39, %v55
    %v61 = vmul.f32 %v40, %v55
    %v62 = vmul.f32 %v41, %v55
    %v63 = vmul.f32 %v42, %v55
    %v64 = vmul.f32 %v43, %v55
    %v65 = vmul.f32 %v44, %v55
    %v66 = vmul.f32 %v45, %v55
    %v67 = vmul.f32 %v46, %v55
    %v68 = vmul.f32 %v47, %v55
    %v69 = vmul.f32 %v48, %v55
    %v70 = vmul.f32 %v49, %v55
    %v71 = vmul.f32 %v50, %v55
    %v72 = vmul.f32 %v51, %v55
    %vm73 = vcmask 261120
    %v74 = vsel %vm73, %v57, 0.0
    %75 = vadd.xlane.f32.xlu0 %v74
    %v76 = vpop.xlane.xlu0 %75
    %v77 = vsel %vm73, %v58, 0.0
    %78 = vadd.xlane.f32.xlu0 %v77
    %v79 = vpop.xlane.xlu0 %78
    %v80 = vsel %vm73, %v59, 0.0
    %81 = vadd.xlane.f32.xlu0 %v80
    %v82 = vpop.xlane.xlu0 %81
    %v83 = vsel %vm73, %v60, 0.0
    %84 = vadd.xlane.f32.xlu0 %v83
    %v85 = vpop.xlane.xlu0 %84
    %v86 = vsel %vm73, %v61, 0.0
    %87 = vadd.xlane.f32.xlu0 %v86
    %v88 = vpop.xlane.xlu0 %87
    %v89 = vsel %vm73, %v62, 0.0
    %90 = vadd.xlane.f32.xlu0 %v89
    %v91 = vpop.xlane.xlu0 %90
    %v92 = vsel %vm73, %v63, 0.0
    %93 = vadd.xlane.f32.xlu0 %v92
    %v94 = vpop.xlane.xlu0 %93
    %v95 = vsel %vm73, %v64, 0.0
    %96 = vadd.xlane.f32.xlu0 %v95
    %v97 = vpop.xlane.xlu0 %96
    %v98 = vsel %vm73, %v65, 0.0
    %99 = vadd.xlane.f32.xlu0 %v98
    %v100 = vpop.xlane.xlu0 %99
    %v101 = vsel %vm73, %v66, 0.0
    %102 = vadd.xlane.f32.xlu0 %v101
    %v103 = vpop.xlane.xlu0 %102
    %v104 = vsel %vm73, %v67, 0.0
    %105 = vadd.xlane.f32.xlu0 %v104
    %v106 = vpop.xlane.xlu0 %105
    %v107 = vsel %vm73, %v68, 0.0
    %108 = vadd.xlane.f32.xlu0 %v107
    %v109 = vpop.xlane.xlu0 %108
    %v110 = vsel %vm73, %v69, 0.0
    %111 = vadd.xlane.f32.xlu0 %v110
    %v112 = vpop.xlane.xlu0 %111
    %v113 = vsel %vm73, %v70, 0.0
    %114 = vadd.xlane.f32.xlu0 %v113
    %v115 = vpop.xlane.xlu0 %114
    %v116 = vsel %vm73, %v71, 0.0
    %117 = vadd.xlane.f32.xlu0 %v116
    %v118 = vpop.xlane.xlu0 %117
    %v119 = vsel %vm73, %v72, 0.0
    %120 = vadd.xlane.f32.xlu0 %v119
    %v121 = vpop.xlane.xlu0 %120
    %v122 = vstv %s35
    %v123 = vadd.f32 %v76, %v122
    %v124 = vadd.f32 %v79, %v122
    %v125 = vadd.f32 %v82, %v122
    %v126 = vadd.f32 %v85, %v122
    %v127 = vadd.f32 %v88, %v122
    %v128 = vadd.f32 %v91, %v122
    %v129 = vadd.f32 %v94, %v122
    %v130 = vadd.f32 %v97, %v122
    %v131 = vadd.f32 %v100, %v122
    %v132 = vadd.f32 %v103, %v122
    %v133 = vadd.f32 %v106, %v122
    %v134 = vadd.f32 %v109, %v122
    %v135 = vadd.f32 %v112, %v122
    %v136 = vadd.f32 %v115, %v122
    %v137 = vadd.f32 %v118, %v122
    %v138 = vadd.f32 %v121, %v122
    %v139 = vlaneseq
    %v140 = vand.u32 %v139, 127
    %141 = vset.pattern.permute.xlu0 0
    %142 = vperm.xlu0 %141, %v52
    %v143 = vpop.permute.xlu0 %142
    %144 = vset.pattern.permute.xlu0 0
    %145 = vperm.xlu0 %144, %v53
    %v146 = vpop.permute.xlu0 %145
    %vm147 = vcmp.lt.s32.totalorder %v140, %v143
    %vm148 = vcmp.lt.s32.totalorder %v140, %v146
    %v165 = vperm.slane %v123, %v140
    %v166 = vperm.slane %v124, %v140
    %v167 = vperm.slane %v125, %v140
    %v168 = vperm.slane %v126, %v140
    %v169 = vperm.slane %v127, %v140
    %v170 = vperm.slane %v128, %v140
    %v171 = vperm.slane %v129, %v140
    %v172 = vperm.slane %v130, %v140
    %v173 = vperm.slane %v131, %v140
    %v174 = vperm.slane %v132, %v140
    %v175 = vperm.slane %v133, %v140
    %v176 = vperm.slane %v134, %v140
    %v177 = vperm.slane %v135, %v140
    %v178 = vperm.slane %v136, %v140
    %v179 = vperm.slane %v137, %v140
    %v180 = vperm.slane %v138, %v140
    %vm181 = vcmask 1041409
    %v182 = vsel %vm181, %v166, %v165
    %vm183 = vcmask 1042434
    %v184 = vsel %vm183, %v167, %v182
    %vm185 = vcmask 1043459
    %v186 = vsel %vm185, %v168, %v184
    %vm187 = vcmask 1044484
    %v188 = vsel %vm187, %v169, %v186
    %vm189 = vcmask 1045509
    %v190 = vsel %vm189, %v170, %v188
    %vm191 = vcmask 1046534
    %v192 = vsel %vm191, %v171, %v190
    %vm193 = vcmask 1047559
    %v194 = vsel %vm193, %v172, %v192
    %v195 = vsel %vm181, %v174, %v173
    %v196 = vsel %vm183, %v175, %v195
    %v197 = vsel %vm185, %v176, %v196
    %v198 = vsel %vm187, %v177, %v197
    %v199 = vsel %vm189, %v178, %v198
    %v200 = vsel %vm191, %v179, %v199
    %v201 = vsel %vm193, %v180, %v200
    %v204 = vsel %vm147, %v194, -inf
    %v205 = vsel %vm148, %v201, -inf
    %vm206 = vcmask 64512
    %v207 = vsel %vm206, %v204, -inf
    %208 = vmax.xlane.f32.xlu0 %v207
    %v209 = vpop.xlane.xlu0 %208
    %v210 = vsel %vm206, %v205, -inf
    %211 = vmax.xlane.f32.xlu0 %v210
    %v212 = vpop.xlane.xlu0 %211
    %v213 = vsub.f32 %v204, %v209
    %v214 = vsub.f32 %v205, %v212
    %v215 = vmul.f32 %v213, 1.442695
    %v216 = vpow.pop %v215
    %v217 = vmul.f32 %v214, 1.442695
    %v218 = vpow.pop %v217
    %v219 = vsel %vm206, %v216, 0.0
    %220 = vadd.xlane.f32.xlu0 %v219
    %v221 = vpop.xlane.xlu0 %220
    %v222 = vsel %vm206, %v218, 0.0
    %223 = vadd.xlane.f32.xlu0 %v222
    %v224 = vpop.xlane.xlu0 %223
    %v225 = vrcp.pop %v221
    %v226 = vmul.f32 %v221, %v225
    %v227 = vsub.f32 1.0, %v226
    %v228 = vmul.f32 %v225, %v227
    %v229 = vadd.f32 %v225, %v228
    %vm230 = vweird.f32 %v221
    %vm231 = vweird.f32 %v225
    %vm232 = vmor %vm230, %vm231
    %v233 = vsel %vm232, %v225, %v229
    %v234 = vand.u32 2147483647, %v221
    %vm235 = vcmp.eq.f32.partialorder %v234, 8.507059e+37
    %v236 = vand.u32 %v221, 2147483648
    %v237 = vor.u32 1.1754944e-38, %v236
    %v238 = vsel %vm235, %v237, %v233
    %v239 = vmul.f32 %v216, %v238
    %v240 = vrcp.pop %v224
    %v241 = vmul.f32 %v224, %v240
    %v242 = vsub.f32 1.0, %v241
    %v243 = vmul.f32 %v240, %v242
    %v244 = vadd.f32 %v240, %v243
    %vm245 = vweird.f32 %v224
    %vm246 = vweird.f32 %v240
    %vm247 = vmor %vm245, %vm246
    %v248 = vsel %vm247, %v240, %v244
    %v249 = vand.u32 2147483647, %v224
    %vm250 = vcmp.eq.f32.partialorder %v249, 8.507059e+37
    %v251 = vand.u32 %v224, 2147483648
    %v252 = vor.u32 1.1754944e-38, %v251
    %v253 = vsel %vm250, %v252, %v248
    %v254 = vmul.f32 %v218, %v253
    %255 = vst.msk [vmem:[%s4] sm:$0xff] %vm206, %v239
    %256 = vst.msk [vmem:[%s4 + $0x8] sm:$0xff] %vm206, %v254
    // Predicated region
    $region22: #{attention_layer.1} parent=1 // pred_check
      _
    $region23: #{attention_layer.1} parent=1 // pred_check_branch
      %258 = sbr.rel (0) target = $region25
    $region24: #{attention_layer.1} parent=1 // pred_region
      _
    $region25: #{attention_layer.1} parent=1 // pred_fallthru
      _
    // Predicated region
    $region26: #{attention_layer.1} parent=1 // pred_check
      _
    $region27: #{attention_layer.1} parent=1 // pred_check_branch
      %260 = sbr.rel (0) target = $region29
    $region28: #{attention_layer.1} parent=1 // pred_region
      _
    $region29: #{attention_layer.1} parent=1 // pred_fallthru
      _
    %261 = vsyncpa [#allocation4], 1

</llo_original>
